<compile_context>
chip_gen: v5e
topology: v5e:2x2
jax: 0.10.0
libtpu: 0.0.40
codegen_flags: <defaults>
</compile_context>

<pallas_src>
import jax
import jax.numpy as jnp
from jax.experimental import pallas as pl
from jax.experimental.pallas import tpu as pltpu

_NUM_PARTIALS = 2                       # slice-axis split (2 TCs on v7x)
_TARGET_BLOCK_BYTES = 4 * 1024 * 1024   # ~4 MiB input block per grid step


def _tv_kernel(x_ref, h_ref, w_ref, acc_h, acc_w):
    """x_ref: (TBC, H, W) VMEM tile.
    h_ref / w_ref: (1, 1, 1) per-partial outputs (written on last inner step).
    acc_h / acc_w: VMEM vector accumulators persisting across the inner axis."""
    i = pl.program_id(1)

    @pl.when(i == 0)
    def _init():
        acc_h[...] = jnp.zeros_like(acc_h)
        acc_w[...] = jnp.zeros_like(acc_w)

    x = x_ref[...].astype(jnp.float32)              # (TBC, H, W)
    dh = x[:, 1:, :] - x[:, :-1, :]                 # (TBC, H-1, W)
    dw = x[:, :, 1:] - x[:, :, :-1]                 # (TBC, H, W-1)
    # Reduce only over the leading slice axis each step (cheap VPU adds, no
    # per-step cross-lane reduce / scalar RMW on the critical path).
    acc_h[...] += jnp.sum(dh * dh, axis=0)          # (H-1, W)
    acc_w[...] += jnp.sum(dw * dw, axis=0)          # (H, W-1)

    @pl.when(i == pl.num_programs(1) - 1)
    def _finalize():
        # Single cross-lane/sublane reduce per partial, done once at the end.
        h_ref[...] = jnp.full((1, 1, 1), jnp.sum(acc_h[...]), jnp.float32)
        w_ref[...] = jnp.full((1, 1, 1), jnp.sum(acc_w[...]), jnp.float32)


def tv_loss(x: jax.Array, tv_loss_weight: float = 1.0) -> jax.Array:
    """Exact equivalent of TVLoss.forward(x) for NCHW input."""
    B, C, H, W = x.shape
    N = B * C
    xr = x.reshape(N, H, W)

    # Block many slices per grid step so each DMA is multiple MiB.
    slice_bytes = H * W * x.dtype.itemsize
    tbc = max(1, min(_TARGET_BLOCK_BYTES // slice_bytes,
                     pl.cdiv(N, _NUM_PARTIALS)))
    bpc = pl.cdiv(N, _NUM_PARTIALS * tbc)           # inner grid steps per partial
    n_pad = _NUM_PARTIALS * tbc * bpc
    if n_pad != N:
        # Zero-padded slices contribute exactly 0 to both sums.
        xr = jnp.pad(xr, ((0, n_pad - N), (0, 0), (0, 0)))

    # TODO(synk): lane-dense repacking of the W axis (pack K slices along lanes
    # with a boundary mask) when W << 128 — left out to keep the kernel simple.
    h_part, w_part = pl.pallas_call(
        _tv_kernel,
        out_shape=(
            jax.ShapeDtypeStruct((_NUM_PARTIALS, 1, 1), jnp.float32),
            jax.ShapeDtypeStruct((_NUM_PARTIALS, 1, 1), jnp.float32),
        ),
        grid=(_NUM_PARTIALS, bpc),
        in_specs=[pl.BlockSpec((tbc, H, W),
                               lambda p, i: (p * bpc + i, 0, 0))],
        out_specs=(
            pl.BlockSpec((1, 1, 1), lambda p, i: (p, 0, 0)),
            pl.BlockSpec((1, 1, 1), lambda p, i: (p, 0, 0)),
        ),
        scratch_shapes=[
            pltpu.VMEM((H - 1, W), jnp.float32),
            pltpu.VMEM((H, W - 1), jnp.float32),
        ],
        compiler_params=pltpu.CompilerParams(
            dimension_semantics=("parallel", "arbitrary"),
            vmem_limit_bytes=48 * 1024 * 1024,
        ),
    )(xr)

    h_tv = jnp.sum(h_part)
    w_tv = jnp.sum(w_part)
    count_h = C * (H - 1) * W   # _tensor_size(x[:, :, 1:, :])
    count_w = C * H * (W - 1)   # _tensor_size(x[:, :, :, 1:])
    return tv_loss_weight * 2.0 * (h_tv / count_h + w_tv / count_w) / B


def _tv_loss_ref(x: jax.Array, tv_loss_weight: float = 1.0) -> jax.Array:
    """Pure-JAX reference (mirrors the PyTorch forward) for verification."""
    B, C, H, W = x.shape
    xf = x.astype(jnp.float32)
    count_h = C * (H - 1) * W
    count_w = C * H * (W - 1)
    h_tv = jnp.sum((xf[:, :, 1:, :] - xf[:, :, : H - 1, :]) ** 2)
    w_tv = jnp.sum((xf[:, :, :, 1:] - xf[:, :, :, : W - 1]) ** 2)
    return tv_loss_weight * 2.0 * (h_tv / count_h + w_tv / count_w) / B


if __name__ == "__main__":
    key = jax.random.PRNGKey(0)
    B, C, H, W = 2, 4, 16, 16
    x = jax.random.normal(key, (B, C, H, W), dtype=jnp.float32)

    out = jax.block_until_ready(tv_loss(x, tv_loss_weight=1.0))
    ref = jax.block_until_ready(_tv_loss_ref(x, tv_loss_weight=1.0))

    assert jnp.allclose(out, ref, rtol=1e-5, atol=1e-5), (out, ref)
    print("KERNEL_OK")
</pallas_src>

<mosaic_0001>
module attributes {stable_mosaic.version = 11 : i64} {
  func.func @_tv_kernel(%arg0: i32, %arg1: i32, %arg2: memref<4x16x16xf32, #tpu.memory_space<vmem>>, %arg3: memref<1x1x1xf32, #tpu.memory_space<vmem>>, %arg4: memref<1x1x1xf32, #tpu.memory_space<vmem>>, %arg5: memref<15x16xf32, #tpu.memory_space<vmem>>, %arg6: memref<16x15xf32, #tpu.memory_space<vmem>>) attributes {dimension_semantics = [#tpu.dimension_semantics<parallel>, #tpu.dimension_semantics<arbitrary>], iteration_bounds = array<i64: 2, 1>, scalar_prefetch = 0 : i64, scratch_operands = 2 : i64, tpu.core_type = #tpu.core_type<tc>, window_params = [{transform_indices = @transform_0, window_bounds = array<i64: 4, 16, 16>}, {transform_indices = @transform_1, window_bounds = array<i64: 1, 1, 1>}, {transform_indices = @transform_2, window_bounds = array<i64: 1, 1, 1>}]} {
    %c0_i32 = arith.constant 0 : i32
    %0 = arith.cmpi eq, %arg1, %c0_i32 : i32
    %1 = arith.extui %0 : i1 to i32
    %c0_i32_0 = arith.constant 0 : i32
    %2 = arith.cmpi ne, %1, %c0_i32_0 : i32
    scf.if %2 {
      %cst_14 = arith.constant 0.000000e+00 : f32
      %23 = vector.broadcast %cst_14 : f32 to vector<15x16xf32>
      %c0_15 = arith.constant 0 : index
      %c0_16 = arith.constant 0 : index
      %24 = vector.load %arg5[%c0_15, %c0_16] : memref<15x16xf32, #tpu.memory_space<vmem>>, vector<15x16xf32>
      tpu.vector_store %arg5[%c0_15, %c0_16], %23 {strides = array<i32>} : memref<15x16xf32, #tpu.memory_space<vmem>>, vector<15x16xf32>,
      %cst_17 = arith.constant 0.000000e+00 : f32
      %25 = vector.broadcast %cst_17 : f32 to vector<16x15xf32>
      %c0_18 = arith.constant 0 : index
      %c0_19 = arith.constant 0 : index
      %26 = vector.load %arg6[%c0_18, %c0_19] : memref<16x15xf32, #tpu.memory_space<vmem>>, vector<16x15xf32>
      tpu.vector_store %arg6[%c0_18, %c0_19], %25 {strides = array<i32>} : memref<16x15xf32, #tpu.memory_space<vmem>>, vector<16x15xf32>,
    } else {
    }
    %c0 = arith.constant 0 : index
    %c0_1 = arith.constant 0 : index
    %c0_2 = arith.constant 0 : index
    %3 = vector.load %arg2[%c0, %c0_1, %c0_2] : memref<4x16x16xf32, #tpu.memory_space<vmem>>, vector<4x16x16xf32>
    %4 = vector.extract_strided_slice %3 {offsets = [0, 1, 0], sizes = [4, 15, 16], strides = [1, 1, 1]} : vector<4x16x16xf32> to vector<4x15x16xf32>
    %5 = vector.extract_strided_slice %3 {offsets = [0, 0, 0], sizes = [4, 15, 16], strides = [1, 1, 1]} : vector<4x16x16xf32> to vector<4x15x16xf32>
    %6 = arith.subf %4, %5 : vector<4x15x16xf32>
    %7 = vector.extract_strided_slice %3 {offsets = [0, 0, 1], sizes = [4, 16, 15], strides = [1, 1, 1]} : vector<4x16x16xf32> to vector<4x16x15xf32>
    %8 = vector.extract_strided_slice %3 {offsets = [0, 0, 0], sizes = [4, 16, 15], strides = [1, 1, 1]} : vector<4x16x16xf32> to vector<4x16x15xf32>
    %9 = arith.subf %7, %8 : vector<4x16x15xf32>
    %c0_3 = arith.constant 0 : index
    %c0_4 = arith.constant 0 : index
    %10 = vector.load %arg5[%c0_3, %c0_4] : memref<15x16xf32, #tpu.memory_space<vmem>>, vector<15x16xf32>
    %11 = arith.mulf %6, %6 : vector<4x15x16xf32>
    %cst = arith.constant dense<0.000000e+00> : vector<15x16xf32>
    %12 = vector.multi_reduction <add>, %11, %cst [0] : vector<4x15x16xf32> to vector<15x16xf32>
    %13 = arith.addf %10, %12 : vector<15x16xf32>
    %c0_5 = arith.constant 0 : index
    %c0_6 = arith.constant 0 : index
    %14 = vector.load %arg5[%c0_5, %c0_6] : memref<15x16xf32, #tpu.memory_space<vmem>>, vector<15x16xf32>
    tpu.vector_store %arg5[%c0_5, %c0_6], %13 {strides = array<i32>} : memref<15x16xf32, #tpu.memory_space<vmem>>, vector<15x16xf32>,
    %c0_7 = arith.constant 0 : index
    %c0_8 = arith.constant 0 : index
    %15 = vector.load %arg6[%c0_7, %c0_8] : memref<16x15xf32, #tpu.memory_space<vmem>>, vector<16x15xf32>
    %16 = arith.mulf %9, %9 : vector<4x16x15xf32>
    %cst_9 = arith.constant dense<0.000000e+00> : vector<16x15xf32>
    %17 = vector.multi_reduction <add>, %16, %cst_9 [0] : vector<4x16x15xf32> to vector<16x15xf32>
    %18 = arith.addf %15, %17 : vector<16x15xf32>
    %c0_10 = arith.constant 0 : index
    %c0_11 = arith.constant 0 : index
    %19 = vector.load %arg6[%c0_10, %c0_11] : memref<16x15xf32, #tpu.memory_space<vmem>>, vector<16x15xf32>
    tpu.vector_store %arg6[%c0_10, %c0_11], %18 {strides = array<i32>} : memref<16x15xf32, #tpu.memory_space<vmem>>, vector<16x15xf32>,
    %c0_i32_12 = arith.constant 0 : i32
    %20 = arith.cmpi eq, %arg1, %c0_i32_12 : i32
    %21 = arith.extui %20 : i1 to i32
    %c0_i32_13 = arith.constant 0 : i32
    %22 = arith.cmpi ne, %21, %c0_i32_13 : i32
    scf.if %22 {
      %c0_14 = arith.constant 0 : index
      %c0_15 = arith.constant 0 : index
      %23 = vector.load %arg5[%c0_14, %c0_15] : memref<15x16xf32, #tpu.memory_space<vmem>>, vector<15x16xf32>
      %24 = vector.shape_cast %23 : vector<15x16xf32> to vector<1x15x16xf32>
      %cst_16 = arith.constant dense<0.000000e+00> : vector<1xf32>
      %25 = vector.multi_reduction <add>, %24, %cst_16 [1, 2] : vector<1x15x16xf32> to vector<1xf32>
      %26 = vector.shape_cast %25 : vector<1xf32> to vector<1x1x1xf32>
      %27 = vector.extract %26[0, 0, 0] : f32 from vector<1x1x1xf32>
      %28 = vector.broadcast %27 : f32 to vector<1x1x1xf32>
      %c0_17 = arith.constant 0 : index
      %c0_18 = arith.constant 0 : index
      %c0_19 = arith.constant 0 : index
      %29 = vector.load %arg3[%c0_17, %c0_18, %c0_19] : memref<1x1x1xf32, #tpu.memory_space<vmem>>, vector<1x1x1xf32>
      tpu.vector_store %arg3[%c0_17, %c0_18, %c0_19], %28 {strides = array<i32>} : memref<1x1x1xf32, #tpu.memory_space<vmem>>, vector<1x1x1xf32>,
      %c0_20 = arith.constant 0 : index
      %c0_21 = arith.constant 0 : index
      %30 = vector.load %arg6[%c0_20, %c0_21] : memref<16x15xf32, #tpu.memory_space<vmem>>, vector<16x15xf32>
      %31 = vector.shape_cast %30 : vector<16x15xf32> to vector<1x16x15xf32>
      %cst_22 = arith.constant dense<0.000000e+00> : vector<1xf32>
      %32 = vector.multi_reduction <add>, %31, %cst_22 [1, 2] : vector<1x16x15xf32> to vector<1xf32>
      %33 = vector.shape_cast %32 : vector<1xf32> to vector<1x1x1xf32>
      %34 = vector.extract %33[0, 0, 0] : f32 from vector<1x1x1xf32>
      %35 = vector.broadcast %34 : f32 to vector<1x1x1xf32>
      %c0_23 = arith.constant 0 : index
      %c0_24 = arith.constant 0 : index
      %c0_25 = arith.constant 0 : index
      %36 = vector.load %arg4[%c0_23, %c0_24, %c0_25] : memref<1x1x1xf32, #tpu.memory_space<vmem>>, vector<1x1x1xf32>
      tpu.vector_store %arg4[%c0_23, %c0_24, %c0_25], %35 {strides = array<i32>} : memref<1x1x1xf32, #tpu.memory_space<vmem>>, vector<1x1x1xf32>,
    } else {
    }
    return
  }
  func.func @transform_0(%arg0: i32, %arg1: i32) -> (i32, i32, i32) {
    %c1_i32 = arith.constant 1 : i32
    %0 = arith.muli %arg0, %c1_i32 : i32
    %1 = arith.addi %0, %arg1 : i32
    %c0_i32 = arith.constant 0 : i32
    %c0_i32_0 = arith.constant 0 : i32
    %c0_i32_1 = arith.constant 0 : i32
    return %1, %c0_i32, %c0_i32_0 : i32, i32, i32
  }
  func.func @transform_1(%arg0: i32, %arg1: i32) -> (i32, i32, i32) {
    %c0_i32 = arith.constant 0 : i32
    %c0_i32_0 = arith.constant 0 : i32
    %c0_i32_1 = arith.constant 0 : i32
    return %arg0, %c0_i32, %c0_i32_0 : i32, i32, i32
  }
  func.func @transform_2(%arg0: i32, %arg1: i32) -> (i32, i32, i32) {
    %c0_i32 = arith.constant 0 : i32
    %c0_i32_0 = arith.constant 0 : i32
    %c0_i32_1 = arith.constant 0 : i32
    return %arg0, %c0_i32, %c0_i32_0 : i32, i32, i32
  }
}

</mosaic_0001>

<llo_original>
// kernel: tpu_custom_call.1
$region0: #{tpu_custom_call.1}
  #allocation0 [shape = 'u32[]', space=smem, size = 0x4, offset = 0x4, fixed_abs, tag = 'smem constant byte address 0x4 - core index']
  #allocation1 [shape = 'u32[72,128]{1,0:T(1,128)}', space=vmem, size = 0x9000, scoped, tag = 'internal scratch']
  #allocation2 [shape = 'f32[15,16]{1,0:T(8,128)}', space=vmem, size = 0x2000, scoped, tag = 'scratch operand']
  #allocation3 [shape = 'f32[16,15]{1,0:T(8,128)}', space=vmem, size = 0x2000, scoped, tag = 'scratch operand']
  %s0 = inlined_call_operand.hbm [shape: f32[8,16,16], index: 0, kind: input, shape index: {}]
  %s1 = inlined_call_operand.vmem [shape: f32[2,1,1], index: 1, kind: output, shape index: {0}]
  %s2 = inlined_call_operand.vmem [shape: f32[2,1,1], index: 2, kind: output, shape index: {1}]
  %3 = xla_tuple %s1, %s2
  %s4 = sld [smem:[#allocation0]]
  $region57: #{tpu_custom_call.1} parent=0
    _
  %s6 = ssub.s32 1, %s4
  %s7 = scalar_select 0, %s6, %s4
  $region1: #{tpu_custom_call.1} parent=0
    #allocation4 [shape = 'u8[65536]{0}', space=vmem, size = 0x10000, scoped, tag = 'input window, operand 0']
    #allocation5 [shape = 's32[2]{0}', space=sflag, size = 0x8, scoped, tag = 'scoped memory for tpu_custom_call.1']
    %8 = vsyncpa [#allocation5], 0
    %s9 = scalar_lea.sflag [#allocation5], 1
    %10 = vsyncpa %s9, 0
    loop: start=0, step=1, limit=4
    $region2: #{tpu_custom_call.1} parent=1 // loop_pre_header
      _
    $region3: #{tpu_custom_call.1} parent=1 // loop_header
      %s12 = sphi 0, %s16
      %p13 = scmp.ge.s32.totalorder %s12, 4
      %s19 = sphi 0, %s31
      %s20 = sphi 0, %s27
      %s21 = sphi 0, %s19
      %s22 = sphi 0, %s20
      %s23 = sphi 0, %s21
      %s24 = sphi 0, %s22
      %s36 = sphi 0, %s38
      %s39 = sphi 0, %s36
      %s40 = sphi 0, %s39
      %s56 = sphi 0, %s40
      %s62 = sphi 0, %s64
      %s65 = sphi 0, %s62
      %s66 = sphi 0, %s65
      %s82 = sphi 0, %s66
      %s88 = sphi 0, %s90
      %s91 = sphi 0, %s88
      %s92 = sphi 0, %s91
      %s108 = sphi 0, %s92
    $region4: #{tpu_custom_call.1} parent=1 // loop_header_branch
      %15 = sbr.rel (%p13) target = $region8
    $region5: #{tpu_custom_call.1} parent=1 // loop_body
      %s17 = ssub.s32 %s12, 1
      %s18 = ssub.s32 %s12, 2
      %s25 = sadd.s32 1, %s20
      %p26 = scmp.ge.s32.totalorder %s25, 1
      %s27 = scalar_select %p26, 0, %s25
      %s28 = sadd.s32 1, %s19
      %s29 = scalar_select %p26, %s28, %s19
      %p30 = scmp.ge.s32.totalorder %s29, 2
      %s31 = scalar_select %p30, 0, %s29
      %s32 = sadd.s32 %s19, %s20
      %s33 = sadd.s32 %s31, %s27
      %s34 = ssub.s32 %s32, %s33
      %p35 = scmp.eq.s32.totalorder %s34, 0
      %s37 = sadd.s32 %s36, 1
      %s38 = scalar_select %p35, %s36, %s37
      %p41 = pneg %p35
      %p42 = scmp.eq.s32.totalorder %s12, 1
      %p43 = por %p41, %p42
      %p44 = scmp.ne.s32.totalorder %s36, %s39
      %p45 = scmp.eq.s32.totalorder %s12, 0
      %p46 = por %p44, %p45
      %p47 = scmp.ne.s32.totalorder %s36, %s39
      %p48 = scmp.eq.s32.totalorder %s17, 1
      %p49 = por %p47, %p48
      %p50 = scmp.ne.s32.totalorder %s39, %s40
      %p51 = scmp.eq.s32.totalorder %s17, 0
      %p52 = por %p50, %p51
      %p53 = scmp.ne.s32.totalorder %s39, %s40
      %p54 = scmp.eq.s32.totalorder %s18, 1
      %p55 = por %p53, %p54
      %p57 = scmp.ne.s32.totalorder %s40, %s56
      %p58 = scmp.eq.s32.totalorder %s18, 0
      %p59 = por %p57, %p58
      %s60 = ssub.s32 %s19, %s31
      %p61 = scmp.eq.s32.totalorder %s60, 0
      %s63 = sadd.s32 %s62, 1
      %s64 = scalar_select %p61, %s62, %s63
      %p67 = pneg %p61
      %p68 = scmp.eq.s32.totalorder %s12, 1
      %p69 = por %p67, %p68
      %p70 = scmp.ne.s32.totalorder %s62, %s65
      %p71 = scmp.eq.s32.totalorder %s12, 0
      %p72 = por %p70, %p71
      %p73 = scmp.ne.s32.totalorder %s62, %s65
      %p74 = scmp.eq.s32.totalorder %s17, 1
      %p75 = por %p73, %p74
      %p76 = scmp.ne.s32.totalorder %s65, %s66
      %p77 = scmp.eq.s32.totalorder %s17, 0
      %p78 = por %p76, %p77
      %p79 = scmp.ne.s32.totalorder %s65, %s66
      %p80 = scmp.eq.s32.totalorder %s18, 1
      %p81 = por %p79, %p80
      %p83 = scmp.ne.s32.totalorder %s66, %s82
      %p84 = scmp.eq.s32.totalorder %s18, 0
      %p85 = por %p83, %p84
      %s86 = ssub.s32 %s19, %s31
      %p87 = scmp.eq.s32.totalorder %s86, 0
      %s89 = sadd.s32 %s88, 1
      %s90 = scalar_select %p87, %s88, %s89
      %p93 = pneg %p87
      %p94 = scmp.eq.s32.totalorder %s12, 1
      %p95 = por %p93, %p94
      %p96 = scmp.ne.s32.totalorder %s88, %s91
      %p97 = scmp.eq.s32.totalorder %s12, 0
      %p98 = por %p96, %p97
      %p99 = scmp.ne.s32.totalorder %s88, %s91
      %p100 = scmp.eq.s32.totalorder %s17, 1
      %p101 = por %p99, %p100
      %p102 = scmp.ne.s32.totalorder %s91, %s92
      %p103 = scmp.eq.s32.totalorder %s17, 0
      %p104 = por %p102, %p103
      %p105 = scmp.ne.s32.totalorder %s91, %s92
      %p106 = scmp.eq.s32.totalorder %s18, 1
      %p107 = por %p105, %p106
      %p109 = scmp.ne.s32.totalorder %s92, %s108
      %p110 = scmp.eq.s32.totalorder %s18, 0
      %p111 = por %p109, %p110
      %p112 = scmp.le.s32.totalorder 1, %s12
      %p113 = scmp.lt.s32.totalorder %s12, 3
      %p114 = pnand %p112, %p113
      %p115 = pneg %p114
      // Predicated region
      $region9: #{tpu_custom_call.1} parent=5 // pred_check
        _
      $region10: #{tpu_custom_call.1} parent=5 // pred_check_branch
        %117 = sbr.rel (%p114) target = $region12
      $region11: #{tpu_custom_call.1} parent=5 // pred_region
        %s118 = ssub.s32 %s12, 1
      $region12: #{tpu_custom_call.1} parent=5 // pred_fallthru
        _
      %p119 = scmp.lt.s32.totalorder %s12, 2
      // Predicated region
      $region13: #{tpu_custom_call.1} parent=5 // pred_check
        %p120 = pneg %p119
      $region14: #{tpu_custom_call.1} parent=5 // pred_check_branch
        %122 = sbr.rel (%p120) target = $region16
      $region15: #{tpu_custom_call.1} parent=5 // pred_region
        // Predicated region
        $region17: #{tpu_custom_call.1} parent=15 // pred_check
          %p123 = pneg %p46
        $region18: #{tpu_custom_call.1} parent=15 // pred_check_branch
          %125 = sbr.rel (%p123) target = $region20
        $region19: #{tpu_custom_call.1} parent=15 // pred_region
          %s126 = sand.u32 %s36, 1
          %s127 = scalar_lea.sflag [#allocation5], %s126
          %s128 = sand.u32 %s36, 1
          %s129 = smul.addr %s128, 64
          %s130 = scalar_lea.vmem [#allocation4], %s129
          %s131 = sadd.s32 %s19, %s20
          %s132 = smul.u32 4, %s131
          %134 = vsyncadd %s127, 0
          %s135 = smul.addr %s132, 2
          %s136 = smul.addr %s135, 8
          %s137 = scalar_lea.hbm %s0, %s136
          %s138 = sshll.u32 %s137, 4
          %s139 = int_to_ptr.hbm [resolvable:$true] %s138
          %s140 = sshll.u32 %s130, 4
          %s141 = int_to_ptr.vmem [resolvable:$true] %s140
          %146 = dma.hbm_to_vmem [thread:$0]  %s139, 1024, %s141, %s127, 128, 128, 8
        $region20: #{tpu_custom_call.1} parent=15 // pred_fallthru
          _
      $region16: #{tpu_custom_call.1} parent=5 // pred_fallthru
        _
      %p147 = scmp.le.s32.totalorder 1, %s12
      %p148 = scmp.lt.s32.totalorder %s12, 3
      %p149 = pnand %p147, %p148
      %p150 = pneg %p149
      // Predicated region
      $region21: #{tpu_custom_call.1} parent=5 // pred_check
        _
      $region22: #{tpu_custom_call.1} parent=5 // pred_check_branch
        %152 = sbr.rel (%p149) target = $region24
      $region23: #{tpu_custom_call.1} parent=5 // pred_region
        %s153 = ssub.s32 %s12, 1
        %s154 = sand.u32 %s39, 1
        %s155 = scalar_lea.sflag [#allocation5], %s154
        %s156 = sand.u32 %s39, 1
        %s157 = smul.addr %s156, 64
        %s158 = scalar_lea.vmem [#allocation4], %s157
        // Predicated region
        $region25: #{tpu_custom_call.1} parent=23 // pred_check
          %p159 = pneg %p52
        $region26: #{tpu_custom_call.1} parent=23 // pred_check_branch
          %161 = sbr.rel (%p159) target = $region28
        $region27: #{tpu_custom_call.1} parent=23 // pred_region
          %163 = dma.done %s155, 1024
        $region28: #{tpu_custom_call.1} parent=23 // pred_fallthru
          _
        %s164 = sand.u32 %s39, 1
        %s165 = scalar_lea.sflag [#allocation5], %s164
        %s166 = sand.u32 %s39, 1
        %s167 = smul.addr %s166, 64
        %s168 = scalar_lea.vmem [#allocation4], %s167
        %p169 = pneg %p52
        %p170 = pneg %p49
        %p171 = pneg %p78
        %p172 = pneg %p75
        %p173 = scmp.lt.s32.totalorder %s21, 1
        %s174 = scalar_select %p173, %s21, 1
        %s175 = scalar_lea.vmem %s1, %s174
        %p176 = pneg %p104
        %p177 = pneg %p101
        %p178 = scmp.lt.s32.totalorder %s21, 1
        %s179 = scalar_select %p178, %s21, 1
        %s180 = scalar_lea.vmem %s2, %s179
        %s181 = sadd.s32 %s21, %s22
        %s182 = smul.u32 4, %s181
        %p183 = scmp.lt.s32.totalorder %s21, 1
        %s184 = scalar_select %p183, %s21, 1
        %s185 = scalar_lea.vmem %s1, %s184
        %p186 = scmp.lt.s32.totalorder %s21, 1
        %s187 = scalar_select %p186, %s21, 1
        %s188 = scalar_lea.vmem %s2, %s187
        %p189 = scmp.eq.s32.totalorder %s22, 0
        // Predicated region
        $region29: #{tpu_custom_call.1} parent=23 // pred_check
          %p190 = pneg %p189
        $region30: #{tpu_custom_call.1} parent=23 // pred_check_branch
          %192 = sbr.rel (%p190) target = $region32
        $region31: #{tpu_custom_call.1} parent=23 // pred_region
          %vm193 = vcmask 130048
          %194 = vst.msk [vmem:[#allocation2] sm:$0xff] %vm193, 0.0
          %vm195 = vcmask 129024
          %196 = vst.msk [vmem:[#allocation2 + $0x8] sm:$0x7f] %vm195, 0.0
          %vm197 = vcmask 121856
          %198 = vst.msk [vmem:[#allocation3] sm:$0xff] %vm197, 0.0
          %199 = vst.msk [vmem:[#allocation3 + $0x8] sm:$0xff] %vm197, 0.0
        $region32: #{tpu_custom_call.1} parent=23 // pred_fallthru
          _
        %v200 = vld [vmem:[%s158] sm:$0xff]
        %v201 = vld [vmem:[%s158 + $0x8] sm:$0xff]
        %v202 = vld [vmem:[%s158 + $0x10] sm:$0xff]
        %v203 = vld [vmem:[%s158 + $0x18] sm:$0xff]
        %v204 = vld [vmem:[%s158 + $0x20] sm:$0xff]
        %v205 = vld [vmem:[%s158 + $0x28] sm:$0xff]
        %v206 = vld [vmem:[%s158 + $0x30] sm:$0xff]
        %v207 = vld [vmem:[%s158 + $0x38] sm:$0xff]
        %vm216 = vcmask 1040384
        %v217 = vrot.slane %v200, 7
        %v218 = vrot.slane %v201, 7
        %v219 = vsel %vm216, %v217, %v218
        %v220 = vrot.slane %v202, 7
        %v221 = vrot.slane %v203, 7
        %v222 = vsel %vm216, %v220, %v221
        %v223 = vrot.slane %v204, 7
        %v224 = vrot.slane %v205, 7
        %v225 = vsel %vm216, %v223, %v224
        %v226 = vrot.slane %v206, 7
        %v227 = vrot.slane %v207, 7
        %v228 = vsel %vm216, %v226, %v227
        %v237 = vsub.f32 %v200, %v217
        %v238 = vsub.f32 %v201, %v219
        %v239 = vsub.f32 %v202, %v220
        %v240 = vsub.f32 %v203, %v222
        %v241 = vsub.f32 %v204, %v223
        %v242 = vsub.f32 %v205, %v225
        %v243 = vsub.f32 %v206, %v226
        %v244 = vsub.f32 %v207, %v228
        %245 = vrot.lane.b32.xlu0 %v200, 1
        %v246 = vpop.permute.xlu0 %245
        %247 = vrot.lane.b32.xlu0 %v201, 1
        %v248 = vpop.permute.xlu0 %247
        %249 = vrot.lane.b32.xlu0 %v202, 1
        %v250 = vpop.permute.xlu0 %249
        %251 = vrot.lane.b32.xlu0 %v203, 1
        %v252 = vpop.permute.xlu0 %251
        %253 = vrot.lane.b32.xlu0 %v204, 1
        %v254 = vpop.permute.xlu0 %253
        %255 = vrot.lane.b32.xlu0 %v205, 1
        %v256 = vpop.permute.xlu0 %255
        %257 = vrot.lane.b32.xlu0 %v206, 1
        %v258 = vpop.permute.xlu0 %257
        %259 = vrot.lane.b32.xlu0 %v207, 1
        %v260 = vpop.permute.xlu0 %259
        %v269 = vsub.f32 %v200, %v246
        %v270 = vsub.f32 %v201, %v248
        %v271 = vsub.f32 %v202, %v250
        %v272 = vsub.f32 %v203, %v252
        %v273 = vsub.f32 %v204, %v254
        %v274 = vsub.f32 %v205, %v256
        %v275 = vsub.f32 %v206, %v258
        %v276 = vsub.f32 %v207, %v260
        %v277 = vld [vmem:[#allocation2] sm:$0xff]
        %v278 = vld [vmem:[#allocation2 + $0x8] sm:$0x7f]
        %v279 = vmul.f32 %v237, %v237
        %v280 = vmul.f32 %v238, %v238
        %v281 = vmul.f32 %v239, %v239
        %v282 = vmul.f32 %v240, %v240
        %v283 = vmul.f32 %v241, %v241
        %v284 = vmul.f32 %v242, %v242
        %v285 = vmul.f32 %v243, %v243
        %v286 = vmul.f32 %v244, %v244
        %vm287 = vcmask 130049
        %v288 = vsel %vm287, %v279, 0.0
        %v289 = vsel %vm287, %v281, 0.0
        %v290 = vadd.f32 %v288, %v289
        %v291 = vsel %vm287, %v283, 0.0
        %v292 = vadd.f32 %v290, %v291
        %v293 = vsel %vm287, %v285, 0.0
        %v294 = vadd.f32 %v292, %v293
        %vm295 = vcmask 130048
        %v296 = vsel %vm295, %v280, 0.0
        %v297 = vsel %vm295, %v282, 0.0
        %v298 = vadd.f32 %v296, %v297
        %v299 = vsel %vm295, %v284, 0.0
        %v300 = vadd.f32 %v298, %v299
        %v301 = vsel %vm295, %v286, 0.0
        %v302 = vadd.f32 %v300, %v301
        %vm305 = vcmask 1046528
        %v306 = vrot.slane %v294, 1
        %v307 = vrot.slane %v302, 1
        %v308 = vsel %vm305, %v306, %v307
        %v311 = vadd.f32 %v277, %v308
        %v312 = vadd.f32 %v278, %v307
        %313 = vst.msk [vmem:[#allocation2] sm:$0xff] %vm295, %v311
        %vm314 = vcmask 129024
        %315 = vst.msk [vmem:[#allocation2 + $0x8] sm:$0x7f] %vm314, %v312
        %v316 = vld [vmem:[#allocation3] sm:$0xff]
        %v317 = vld [vmem:[#allocation3 + $0x8] sm:$0xff]
        %v318 = vmul.f32 %v269, %v269
        %v319 = vmul.f32 %v270, %v270
        %v320 = vmul.f32 %v271, %v271
        %v321 = vmul.f32 %v272, %v272
        %v322 = vmul.f32 %v273, %v273
        %v323 = vmul.f32 %v274, %v274
        %v324 = vmul.f32 %v275, %v275
        %v325 = vmul.f32 %v276, %v276
        %vm326 = vcmask 130056
        %v327 = vsel %vm326, %v318, 0.0
        %v328 = vsel %vm326, %v320, 0.0
        %v329 = vadd.f32 %v327, %v328
        %v330 = vsel %vm326, %v322, 0.0
        %v331 = vadd.f32 %v329, %v330
        %v332 = vsel %vm326, %v324, 0.0
        %v333 = vadd.f32 %v331, %v332
        %v334 = vsel %vm326, %v319, 0.0
        %v335 = vsel %vm326, %v321, 0.0
        %v336 = vadd.f32 %v334, %v335
        %v337 = vsel %vm326, %v323, 0.0
        %v338 = vadd.f32 %v336, %v337
        %v339 = vsel %vm326, %v325, 0.0
        %v340 = vadd.f32 %v338, %v339
        %343 = vrot.lane.b32.xlu0 %v333, 127
        %v344 = vpop.permute.xlu0 %343
        %345 = vrot.lane.b32.xlu0 %v340, 127
        %v346 = vpop.permute.xlu0 %345
        %v349 = vadd.f32 %v316, %v344
        %v350 = vadd.f32 %v317, %v346
        %vm351 = vcmask 121856
        %352 = vst.msk [vmem:[#allocation3] sm:$0xff] %vm351, %v349
        %353 = vst.msk [vmem:[#allocation3 + $0x8] sm:$0xff] %vm351, %v350
        // Predicated region
        $region33: #{tpu_custom_call.1} parent=23 // pred_check
          %p354 = pneg %p189
        $region34: #{tpu_custom_call.1} parent=23 // pred_check_branch
          %356 = sbr.rel (%p354) target = $region36
        $region35: #{tpu_custom_call.1} parent=23 // pred_region
          %v357 = vld [vmem:[#allocation2] sm:$0xff]
          %v358 = vld [vmem:[#allocation2 + $0x8] sm:$0x7f]
          %v359 = vsel %vm295, %v357, 0.0
          %v360 = vsel %vm314, %v358, 0.0
          %v361 = vadd.f32 %v359, %v360
          %362 = vadd.xlane.f32.xlu0 %v361
          %v363 = vpop.xlane.xlu0 %362
          %v364 = vrot.slane %v363, 4
          %v365 = vadd.f32 %v363, %v364
          %v366 = vrot.slane %v365, 2
          %v367 = vadd.f32 %v365, %v366
          %v368 = vrot.slane %v367, 1
          %v369 = vadd.f32 %v367, %v368
          %s370 = vtos %v369
          %v371 = vstv %s370
          %vm372 = vcmask 0
          %373 = vst.msk [vmem:[%s185] sm:$0x1] %vm372, %v371
          %v374 = vld [vmem:[#allocation3] sm:$0xff]
          %v375 = vld [vmem:[#allocation3 + $0x8] sm:$0xff]
          %v376 = vsel %vm351, %v374, 0.0
          %v377 = vsel %vm351, %v375, 0.0
          %v378 = vadd.f32 %v376, %v377
          %379 = vadd.xlane.f32.xlu0 %v378
          %v380 = vpop.xlane.xlu0 %379
          %v381 = vrot.slane %v380, 4
          %v382 = vadd.f32 %v380, %v381
          %v383 = vrot.slane %v382, 2
          %v384 = vadd.f32 %v382, %v383
          %v385 = vrot.slane %v384, 1
          %v386 = vadd.f32 %v384, %v385
          %s387 = vtos %v386
          %v388 = vstv %s387
          %389 = vst.msk [vmem:[%s188] sm:$0x1] %vm372, %v388
        $region36: #{tpu_custom_call.1} parent=23 // pred_fallthru
          _
        %p390 = scmp.lt.s32.totalorder %s21, 1
        %s391 = scalar_select %p390, %s21, 1
        %s392 = scalar_lea.vmem %s1, %s391
        %p393 = scmp.lt.s32.totalorder %s21, 1
        %s394 = scalar_select %p393, %s21, 1
        %s395 = scalar_lea.vmem %s2, %s394
        // Predicated region
        $region37: #{tpu_custom_call.1} parent=23 // pred_check
          %p396 = pneg %p75
        $region38: #{tpu_custom_call.1} parent=23 // pred_check_branch
          %398 = sbr.rel (%p396) target = $region40
        $region39: #{tpu_custom_call.1} parent=23 // pred_region
          _
        $region40: #{tpu_custom_call.1} parent=23 // pred_fallthru
          _
        // Predicated region
        $region41: #{tpu_custom_call.1} parent=23 // pred_check
          %p399 = pneg %p101
        $region42: #{tpu_custom_call.1} parent=23 // pred_check_branch
          %401 = sbr.rel (%p399) target = $region44
        $region43: #{tpu_custom_call.1} parent=23 // pred_region
          _
        $region44: #{tpu_custom_call.1} parent=23 // pred_fallthru
          _
      $region24: #{tpu_custom_call.1} parent=5 // pred_fallthru
        _
      %p402 = scmp.le.s32.totalorder 2, %s12
      // Predicated region
      $region45: #{tpu_custom_call.1} parent=5 // pred_check
        %p403 = pneg %p402
      $region46: #{tpu_custom_call.1} parent=5 // pred_check_branch
        %405 = sbr.rel (%p403) target = $region48
      $region47: #{tpu_custom_call.1} parent=5 // pred_region
        %s406 = ssub.s32 %s12, 2
        // Predicated region
        $region49: #{tpu_custom_call.1} parent=47 // pred_check
          %p407 = pneg %p81
        $region50: #{tpu_custom_call.1} parent=47 // pred_check_branch
          %409 = sbr.rel (%p407) target = $region52
        $region51: #{tpu_custom_call.1} parent=47 // pred_region
          %p410 = scmp.lt.s32.totalorder %s23, 1
          %s411 = scalar_select %p410, %s23, 1
          %s412 = scalar_lea.vmem %s1, %s411
        $region52: #{tpu_custom_call.1} parent=47 // pred_fallthru
          _
        // Predicated region
        $region53: #{tpu_custom_call.1} parent=47 // pred_check
          %p413 = pneg %p107
        $region54: #{tpu_custom_call.1} parent=47 // pred_check_branch
          %415 = sbr.rel (%p413) target = $region56
        $region55: #{tpu_custom_call.1} parent=47 // pred_region
          %p416 = scmp.lt.s32.totalorder %s23, 1
          %s417 = scalar_select %p416, %s23, 1
          %s418 = scalar_lea.vmem %s2, %s417
        $region56: #{tpu_custom_call.1} parent=47 // pred_fallthru
          _
      $region48: #{tpu_custom_call.1} parent=5 // pred_fallthru
        _
    $region6: #{tpu_custom_call.1} parent=1 // loop_footer
      %s16 = sadd.s32 1, %s12
    $region7: #{tpu_custom_call.1} parent=1 // loop_footer_branch
      %11 = sbr.rel target = $region3
    $region8: #{tpu_custom_call.1} parent=1 // loop_exit
      _
    %419 = vsyncpa [#allocation5], 1
    %s420 = scalar_lea.sflag [#allocation5], 1
    %421 = vsyncpa %s420, 1

</llo_original>
